<compile_context>
chip_gen: v7x
topology: tpu7x:2x2x1
jax: 0.10.0
libtpu: 0.0.40
codegen_flags: <defaults>
</compile_context>

<pallas_src>
import jax
import jax.numpy as jnp
from jax.experimental import pallas as pl
from jax.experimental.pallas import tpu as pltpu


def mvwp_kernel(params_ref, pts_ref, out_ref):
    """params_ref: SMEM [B*V, 12] f32   (m00 m01 m02 c0 | m10 m11 m12 c1 | rz0 rz1 rz2 tz)
       pts_ref:    VMEM [1, 3, TILE_L]  f32
       out_ref:    VMEM [1, V, 2, TILE_L] f32"""
    num_views = out_ref.shape[1]
    b = pl.program_id(0)

    pts = pts_ref[0]                  # [3, TILE_L]
    x = pts[0:1, :]
    y = pts[1:2, :]
    z = pts[2:3, :]

    # Static unroll over views: matrices are scalar SMEM reads broadcast on the VPU.
    for v in range(num_views):
        row = b * num_views + v
        m00 = params_ref[row, 0]
        m01 = params_ref[row, 1]
        m02 = params_ref[row, 2]
        c0 = params_ref[row, 3]
        m10 = params_ref[row, 4]
        m11 = params_ref[row, 5]
        m12 = params_ref[row, 6]
        c1 = params_ref[row, 7]
        rz0 = params_ref[row, 8]
        rz1 = params_ref[row, 9]
        rz2 = params_ref[row, 10]
        tz = params_ref[row, 11]

        zc = rz0 * x + rz1 * y + rz2 * z + tz     # camera-frame depth        [1, TILE_L]
        inv = 1.0 / (zc + 1e-7)                   # exact divide (review: no approx reciprocal)
        out_ref[0, v, 0:1, :] = (m00 * x + m01 * y + m02 * z + c0) * inv
        out_ref[0, v, 1:2, :] = (m10 * x + m11 * y + m12 * z + c1) * inv


def mv_weak_perspective(points, rotation=None, translation=None,
                        intrinsics=None, transform=None, *, max_tile_l=4096):
    """points [T,L,3], transform [T,V,4,4], intrinsics [T,V,3,3] -> [T,V,L,2].
    rotation / translation are accepted but unused (same as the reference module)."""
    B, L, _ = points.shape
    V = transform.shape[1]

    tf = transform.astype(jnp.float32)
    K = intrinsics.astype(jnp.float32)
    R = tf[..., :3, :3]               # [B,V,3,3]
    t = tf[..., :3, 3]                # [B,V,3]

    # Fuse intrinsics into extrinsics:  K @ (Rp + t) / (z+eps)  ==  K @ ((Rp + t)/(z+eps))
    M = jnp.einsum('bvij,bvjk->bvik', K[:, :, :2, :], R,
                   precision=jax.lax.Precision.HIGHEST)          # [B,V,2,3]
    c = jnp.einsum('bvij,bvj->bvi', K[:, :, :2, :], t,
                   precision=jax.lax.Precision.HIGHEST)          # [B,V,2]
    params = jnp.concatenate([
        M[:, :, 0, :], c[:, :, 0:1],       # m00 m01 m02 c0
        M[:, :, 1, :], c[:, :, 1:2],       # m10 m11 m12 c1
        R[:, :, 2, :], t[:, :, 2:3],       # rz0 rz1 rz2 tz
    ], axis=-1).reshape(B * V, 12)                               # -> SMEM table

    pts_t = jnp.transpose(points, (0, 2, 1)).astype(jnp.float32)  # [B, 3, L] (lane-dense on L)

    # Lane-dense point tiles; whole L in one block when small, 4096-wide tiles otherwise.
    tile_l = L if L <= max_tile_l else max_tile_l
    grid = (B, pl.cdiv(L, tile_l))

    out = pl.pallas_call(
        mvwp_kernel,
        out_shape=jax.ShapeDtypeStruct((B, V, 2, L), jnp.float32),
        grid_spec=pltpu.PrefetchScalarGridSpec(
            num_scalar_prefetch=0,
            grid=grid,
            in_specs=[
                pl.BlockSpec(memory_space=pltpu.SMEM),                   # per-view scalar table
                pl.BlockSpec((1, 3, tile_l), lambda b, l: (b, 0, l)),    # point tile
            ],
            out_specs=pl.BlockSpec((1, V, 2, tile_l), lambda b, l: (b, 0, 0, l)),
        ),
        compiler_params=pltpu.CompilerParams(
            # both axes write disjoint output blocks -> shard across TCs (v7x megacore)
            dimension_semantics=("parallel", "parallel")),
    )(params, pts_t)

    # Match the PyTorch layout [T, N, L, 2].
    # TODO(synk): if the consumer can take [..., 2, L], drop this transpose (extra HBM pass).
    return jnp.transpose(out, (0, 1, 3, 2))


def mv_weak_perspective_ref(points, transform, intrinsics):
    """Pure-JAX mirror of the PyTorch forward (unfused formulation)."""
    R = transform[..., :3, :3]                       # [B,V,3,3]
    t = transform[..., :3, 3]                        # [B,V,3]
    cam = jnp.einsum('bpj,bvij->bvpi', points, R,
                     precision=jax.lax.Precision.HIGHEST) + t[:, :, None, :]
    homo = cam / (cam[..., 2:3] + 1e-7)
    proj = jnp.einsum('bvpi,bvji->bvpj', homo, intrinsics,
                      precision=jax.lax.Precision.HIGHEST)
    return proj[..., :2]


if __name__ == "__main__":
    T, V, L = 2, 3, 128   # temporal window, camera views, number of points

    key = jax.random.PRNGKey(0)
    points = jax.random.normal(key, (T, L, 3), dtype=jnp.float32) * 0.5   # [T,L,3]

    # Deterministic per-view rigid transforms (rotation about z + translation with z >> 0).
    b_idx = jnp.arange(T, dtype=jnp.float32)[:, None]
    v_idx = jnp.arange(V, dtype=jnp.float32)[None, :]
    theta = 0.1 * v_idx + 0.05 * b_idx                                    # [T,V]
    c, s = jnp.cos(theta), jnp.sin(theta)
    zeros, ones = jnp.zeros_like(c), jnp.ones_like(c)
    tx = 0.1 * v_idx + 0.0 * b_idx
    ty = -0.05 * b_idx + 0.0 * v_idx
    tz = 5.0 + 0.5 * v_idx + 0.0 * b_idx
    transform = jnp.stack([
        jnp.stack([c, -s, zeros, tx], axis=-1),
        jnp.stack([s,  c, zeros, ty], axis=-1),
        jnp.stack([zeros, zeros, ones, tz], axis=-1),
        jnp.stack([zeros, zeros, zeros, ones], axis=-1),
    ], axis=-2)                                                            # [T,V,4,4]

    fx = 500.0 + 10.0 * v_idx + 0.0 * b_idx
    fy = 500.0 + 5.0 * b_idx + 0.0 * v_idx
    cx = 320.0 * ones
    cy = 240.0 * ones
    intrinsics = jnp.stack([
        jnp.stack([fx, zeros, cx], axis=-1),
        jnp.stack([zeros, fy, cy], axis=-1),
        jnp.stack([zeros, zeros, ones], axis=-1),
    ], axis=-2)                                                            # [T,V,3,3]

    out = mv_weak_perspective(points, intrinsics=intrinsics, transform=transform)
    out = jax.block_until_ready(out)

    ref = mv_weak_perspective_ref(points, transform, intrinsics)
    assert out.shape == (T, V, L, 2), out.shape
    assert jnp.allclose(out, ref, rtol=1e-5, atol=1e-3), \
        f"max abs err {jnp.max(jnp.abs(out - ref))}"

    print("KERNEL_OK")
</pallas_src>

<mosaic_0001>
module attributes {stable_mosaic.version = 11 : i64} {
  func.func @mvwp_kernel(%arg0: i32, %arg1: i32, %arg2: memref<6x12xf32, #tpu.memory_space<smem>>, %arg3: memref<1x3x128xf32, #tpu.memory_space<vmem>>, %arg4: memref<1x3x2x128xf32, #tpu.memory_space<vmem>>) attributes {dimension_semantics = [#tpu.dimension_semantics<parallel>, #tpu.dimension_semantics<parallel>], iteration_bounds = array<i64: 2, 1>, scalar_prefetch = 0 : i64, scratch_operands = 0 : i64, tpu.core_type = #tpu.core_type<tc>, window_params = [{transform_indices = @transform_0, window_bounds = array<i64: 6, 12>}, {transform_indices = @transform_1, window_bounds = array<i64: 1, 3, 128>}, {transform_indices = @transform_2, window_bounds = array<i64: 1, 3, 2, 128>}]} {
    %c0 = arith.constant 0 : index
    %c0_0 = arith.constant 0 : index
    %c0_1 = arith.constant 0 : index
    %0 = vector.load %arg3[%c0, %c0_0, %c0_1] : memref<1x3x128xf32, #tpu.memory_space<vmem>>, vector<1x3x128xf32>
    %1 = vector.shape_cast %0 : vector<1x3x128xf32> to vector<3x128xf32>
    %2 = vector.extract_strided_slice %1 {offsets = [0, 0], sizes = [1, 128], strides = [1, 1]} : vector<3x128xf32> to vector<1x128xf32>
    %3 = vector.extract_strided_slice %1 {offsets = [1, 0], sizes = [1, 128], strides = [1, 1]} : vector<3x128xf32> to vector<1x128xf32>
    %4 = vector.extract_strided_slice %1 {offsets = [2, 0], sizes = [1, 128], strides = [1, 1]} : vector<3x128xf32> to vector<1x128xf32>
    %c3_i32 = arith.constant 3 : i32
    %5 = arith.muli %arg0, %c3_i32 : i32
    %c0_i32 = arith.constant 0 : i32
    %6 = arith.addi %5, %c0_i32 : i32
    %7 = arith.index_cast %6 : i32 to index
    %c0_2 = arith.constant 0 : index
    %8 = memref.load %arg2[%7, %c0_2] : memref<6x12xf32, #tpu.memory_space<smem>>
    %9 = arith.index_cast %6 : i32 to index
    %c1 = arith.constant 1 : index
    %10 = memref.load %arg2[%9, %c1] : memref<6x12xf32, #tpu.memory_space<smem>>
    %11 = arith.index_cast %6 : i32 to index
    %c2 = arith.constant 2 : index
    %12 = memref.load %arg2[%11, %c2] : memref<6x12xf32, #tpu.memory_space<smem>>
    %13 = arith.index_cast %6 : i32 to index
    %c3 = arith.constant 3 : index
    %14 = memref.load %arg2[%13, %c3] : memref<6x12xf32, #tpu.memory_space<smem>>
    %15 = arith.index_cast %6 : i32 to index
    %c4 = arith.constant 4 : index
    %16 = memref.load %arg2[%15, %c4] : memref<6x12xf32, #tpu.memory_space<smem>>
    %17 = arith.index_cast %6 : i32 to index
    %c5 = arith.constant 5 : index
    %18 = memref.load %arg2[%17, %c5] : memref<6x12xf32, #tpu.memory_space<smem>>
    %19 = arith.index_cast %6 : i32 to index
    %c6 = arith.constant 6 : index
    %20 = memref.load %arg2[%19, %c6] : memref<6x12xf32, #tpu.memory_space<smem>>
    %21 = arith.index_cast %6 : i32 to index
    %c7 = arith.constant 7 : index
    %22 = memref.load %arg2[%21, %c7] : memref<6x12xf32, #tpu.memory_space<smem>>
    %23 = arith.index_cast %6 : i32 to index
    %c8 = arith.constant 8 : index
    %24 = memref.load %arg2[%23, %c8] : memref<6x12xf32, #tpu.memory_space<smem>>
    %25 = arith.index_cast %6 : i32 to index
    %c9 = arith.constant 9 : index
    %26 = memref.load %arg2[%25, %c9] : memref<6x12xf32, #tpu.memory_space<smem>>
    %27 = arith.index_cast %6 : i32 to index
    %c10 = arith.constant 10 : index
    %28 = memref.load %arg2[%27, %c10] : memref<6x12xf32, #tpu.memory_space<smem>>
    %29 = arith.index_cast %6 : i32 to index
    %c11 = arith.constant 11 : index
    %30 = memref.load %arg2[%29, %c11] : memref<6x12xf32, #tpu.memory_space<smem>>
    %31 = vector.broadcast %24 : f32 to vector<1x128xf32>
    %32 = arith.mulf %31, %2 : vector<1x128xf32>
    %33 = vector.broadcast %26 : f32 to vector<1x128xf32>
    %34 = arith.mulf %33, %3 : vector<1x128xf32>
    %35 = arith.addf %32, %34 : vector<1x128xf32>
    %36 = vector.broadcast %28 : f32 to vector<1x128xf32>
    %37 = arith.mulf %36, %4 : vector<1x128xf32>
    %38 = arith.addf %35, %37 : vector<1x128xf32>
    %39 = vector.broadcast %30 : f32 to vector<1x128xf32>
    %40 = arith.addf %38, %39 : vector<1x128xf32>
    %cst = arith.constant 1.000000e-07 : f32
    %41 = vector.broadcast %cst : f32 to vector<1x128xf32>
    %42 = arith.addf %40, %41 : vector<1x128xf32>
    %cst_3 = arith.constant 1.000000e+00 : f32
    %43 = vector.broadcast %cst_3 : f32 to vector<1x128xf32>
    %44 = arith.divf %43, %42 : vector<1x128xf32>
    %45 = vector.broadcast %8 : f32 to vector<1x128xf32>
    %46 = arith.mulf %45, %2 : vector<1x128xf32>
    %47 = vector.broadcast %10 : f32 to vector<1x128xf32>
    %48 = arith.mulf %47, %3 : vector<1x128xf32>
    %49 = arith.addf %46, %48 : vector<1x128xf32>
    %50 = vector.broadcast %12 : f32 to vector<1x128xf32>
    %51 = arith.mulf %50, %4 : vector<1x128xf32>
    %52 = arith.addf %49, %51 : vector<1x128xf32>
    %53 = vector.broadcast %14 : f32 to vector<1x128xf32>
    %54 = arith.addf %52, %53 : vector<1x128xf32>
    %55 = arith.mulf %54, %44 : vector<1x128xf32>
    %c0_4 = arith.constant 0 : index
    %c0_5 = arith.constant 0 : index
    %c0_6 = arith.constant 0 : index
    %c0_7 = arith.constant 0 : index
    %56 = vector.load %arg4[%c0_4, %c0_5, %c0_6, %c0_7] : memref<1x3x2x128xf32, #tpu.memory_space<vmem>>, vector<1x1x1x128xf32>
    %57 = vector.shape_cast %56 : vector<1x1x1x128xf32> to vector<1x128xf32>
    %58 = vector.shape_cast %55 : vector<1x128xf32> to vector<1x1x1x128xf32>
    tpu.vector_store %arg4[%c0_4, %c0_5, %c0_6, %c0_7], %58 {strides = array<i32>} : memref<1x3x2x128xf32, #tpu.memory_space<vmem>>, vector<1x1x1x128xf32>,
    %59 = vector.broadcast %16 : f32 to vector<1x128xf32>
    %60 = arith.mulf %59, %2 : vector<1x128xf32>
    %61 = vector.broadcast %18 : f32 to vector<1x128xf32>
    %62 = arith.mulf %61, %3 : vector<1x128xf32>
    %63 = arith.addf %60, %62 : vector<1x128xf32>
    %64 = vector.broadcast %20 : f32 to vector<1x128xf32>
    %65 = arith.mulf %64, %4 : vector<1x128xf32>
    %66 = arith.addf %63, %65 : vector<1x128xf32>
    %67 = vector.broadcast %22 : f32 to vector<1x128xf32>
    %68 = arith.addf %66, %67 : vector<1x128xf32>
    %69 = arith.mulf %68, %44 : vector<1x128xf32>
    %c0_8 = arith.constant 0 : index
    %c0_9 = arith.constant 0 : index
    %c1_10 = arith.constant 1 : index
    %c0_11 = arith.constant 0 : index
    %70 = vector.load %arg4[%c0_8, %c0_9, %c1_10, %c0_11] : memref<1x3x2x128xf32, #tpu.memory_space<vmem>>, vector<1x1x1x128xf32>
    %71 = vector.shape_cast %70 : vector<1x1x1x128xf32> to vector<1x128xf32>
    %72 = vector.shape_cast %69 : vector<1x128xf32> to vector<1x1x1x128xf32>
    tpu.vector_store %arg4[%c0_8, %c0_9, %c1_10, %c0_11], %72 {strides = array<i32>} : memref<1x3x2x128xf32, #tpu.memory_space<vmem>>, vector<1x1x1x128xf32>,
    %c3_i32_12 = arith.constant 3 : i32
    %73 = arith.muli %arg0, %c3_i32_12 : i32
    %c1_i32 = arith.constant 1 : i32
    %74 = arith.addi %73, %c1_i32 : i32
    %75 = arith.index_cast %74 : i32 to index
    %c0_13 = arith.constant 0 : index
    %76 = memref.load %arg2[%75, %c0_13] : memref<6x12xf32, #tpu.memory_space<smem>>
    %77 = arith.index_cast %74 : i32 to index
    %c1_14 = arith.constant 1 : index
    %78 = memref.load %arg2[%77, %c1_14] : memref<6x12xf32, #tpu.memory_space<smem>>
    %79 = arith.index_cast %74 : i32 to index
    %c2_15 = arith.constant 2 : index
    %80 = memref.load %arg2[%79, %c2_15] : memref<6x12xf32, #tpu.memory_space<smem>>
    %81 = arith.index_cast %74 : i32 to index
    %c3_16 = arith.constant 3 : index
    %82 = memref.load %arg2[%81, %c3_16] : memref<6x12xf32, #tpu.memory_space<smem>>
    %83 = arith.index_cast %74 : i32 to index
    %c4_17 = arith.constant 4 : index
    %84 = memref.load %arg2[%83, %c4_17] : memref<6x12xf32, #tpu.memory_space<smem>>
    %85 = arith.index_cast %74 : i32 to index
    %c5_18 = arith.constant 5 : index
    %86 = memref.load %arg2[%85, %c5_18] : memref<6x12xf32, #tpu.memory_space<smem>>
    %87 = arith.index_cast %74 : i32 to index
    %c6_19 = arith.constant 6 : index
    %88 = memref.load %arg2[%87, %c6_19] : memref<6x12xf32, #tpu.memory_space<smem>>
    %89 = arith.index_cast %74 : i32 to index
    %c7_20 = arith.constant 7 : index
    %90 = memref.load %arg2[%89, %c7_20] : memref<6x12xf32, #tpu.memory_space<smem>>
    %91 = arith.index_cast %74 : i32 to index
    %c8_21 = arith.constant 8 : index
    %92 = memref.load %arg2[%91, %c8_21] : memref<6x12xf32, #tpu.memory_space<smem>>
    %93 = arith.index_cast %74 : i32 to index
    %c9_22 = arith.constant 9 : index
    %94 = memref.load %arg2[%93, %c9_22] : memref<6x12xf32, #tpu.memory_space<smem>>
    %95 = arith.index_cast %74 : i32 to index
    %c10_23 = arith.constant 10 : index
    %96 = memref.load %arg2[%95, %c10_23] : memref<6x12xf32, #tpu.memory_space<smem>>
    %97 = arith.index_cast %74 : i32 to index
    %c11_24 = arith.constant 11 : index
    %98 = memref.load %arg2[%97, %c11_24] : memref<6x12xf32, #tpu.memory_space<smem>>
    %99 = vector.broadcast %92 : f32 to vector<1x128xf32>
    %100 = arith.mulf %99, %2 : vector<1x128xf32>
    %101 = vector.broadcast %94 : f32 to vector<1x128xf32>
    %102 = arith.mulf %101, %3 : vector<1x128xf32>
    %103 = arith.addf %100, %102 : vector<1x128xf32>
    %104 = vector.broadcast %96 : f32 to vector<1x128xf32>
    %105 = arith.mulf %104, %4 : vector<1x128xf32>
    %106 = arith.addf %103, %105 : vector<1x128xf32>
    %107 = vector.broadcast %98 : f32 to vector<1x128xf32>
    %108 = arith.addf %106, %107 : vector<1x128xf32>
    %cst_25 = arith.constant 1.000000e-07 : f32
    %109 = vector.broadcast %cst_25 : f32 to vector<1x128xf32>
    %110 = arith.addf %108, %109 : vector<1x128xf32>
    %cst_26 = arith.constant 1.000000e+00 : f32
    %111 = vector.broadcast %cst_26 : f32 to vector<1x128xf32>
    %112 = arith.divf %111, %110 : vector<1x128xf32>
    %113 = vector.broadcast %76 : f32 to vector<1x128xf32>
    %114 = arith.mulf %113, %2 : vector<1x128xf32>
    %115 = vector.broadcast %78 : f32 to vector<1x128xf32>
    %116 = arith.mulf %115, %3 : vector<1x128xf32>
    %117 = arith.addf %114, %116 : vector<1x128xf32>
    %118 = vector.broadcast %80 : f32 to vector<1x128xf32>
    %119 = arith.mulf %118, %4 : vector<1x128xf32>
    %120 = arith.addf %117, %119 : vector<1x128xf32>
    %121 = vector.broadcast %82 : f32 to vector<1x128xf32>
    %122 = arith.addf %120, %121 : vector<1x128xf32>
    %123 = arith.mulf %122, %112 : vector<1x128xf32>
    %c0_27 = arith.constant 0 : index
    %c1_28 = arith.constant 1 : index
    %c0_29 = arith.constant 0 : index
    %c0_30 = arith.constant 0 : index
    %124 = vector.load %arg4[%c0_27, %c1_28, %c0_29, %c0_30] : memref<1x3x2x128xf32, #tpu.memory_space<vmem>>, vector<1x1x1x128xf32>
    %125 = vector.shape_cast %124 : vector<1x1x1x128xf32> to vector<1x128xf32>
    %126 = vector.shape_cast %123 : vector<1x128xf32> to vector<1x1x1x128xf32>
    tpu.vector_store %arg4[%c0_27, %c1_28, %c0_29, %c0_30], %126 {strides = array<i32>} : memref<1x3x2x128xf32, #tpu.memory_space<vmem>>, vector<1x1x1x128xf32>,
    %127 = vector.broadcast %84 : f32 to vector<1x128xf32>
    %128 = arith.mulf %127, %2 : vector<1x128xf32>
    %129 = vector.broadcast %86 : f32 to vector<1x128xf32>
    %130 = arith.mulf %129, %3 : vector<1x128xf32>
    %131 = arith.addf %128, %130 : vector<1x128xf32>
    %132 = vector.broadcast %88 : f32 to vector<1x128xf32>
    %133 = arith.mulf %132, %4 : vector<1x128xf32>
    %134 = arith.addf %131, %133 : vector<1x128xf32>
    %135 = vector.broadcast %90 : f32 to vector<1x128xf32>
    %136 = arith.addf %134, %135 : vector<1x128xf32>
    %137 = arith.mulf %136, %112 : vector<1x128xf32>
    %c0_31 = arith.constant 0 : index
    %c1_32 = arith.constant 1 : index
    %c1_33 = arith.constant 1 : index
    %c0_34 = arith.constant 0 : index
    %138 = vector.load %arg4[%c0_31, %c1_32, %c1_33, %c0_34] : memref<1x3x2x128xf32, #tpu.memory_space<vmem>>, vector<1x1x1x128xf32>
    %139 = vector.shape_cast %138 : vector<1x1x1x128xf32> to vector<1x128xf32>
    %140 = vector.shape_cast %137 : vector<1x128xf32> to vector<1x1x1x128xf32>
    tpu.vector_store %arg4[%c0_31, %c1_32, %c1_33, %c0_34], %140 {strides = array<i32>} : memref<1x3x2x128xf32, #tpu.memory_space<vmem>>, vector<1x1x1x128xf32>,
    %c3_i32_35 = arith.constant 3 : i32
    %141 = arith.muli %arg0, %c3_i32_35 : i32
    %c2_i32 = arith.constant 2 : i32
    %142 = arith.addi %141, %c2_i32 : i32
    %143 = arith.index_cast %142 : i32 to index
    %c0_36 = arith.constant 0 : index
    %144 = memref.load %arg2[%143, %c0_36] : memref<6x12xf32, #tpu.memory_space<smem>>
    %145 = arith.index_cast %142 : i32 to index
    %c1_37 = arith.constant 1 : index
    %146 = memref.load %arg2[%145, %c1_37] : memref<6x12xf32, #tpu.memory_space<smem>>
    %147 = arith.index_cast %142 : i32 to index
    %c2_38 = arith.constant 2 : index
    %148 = memref.load %arg2[%147, %c2_38] : memref<6x12xf32, #tpu.memory_space<smem>>
    %149 = arith.index_cast %142 : i32 to index
    %c3_39 = arith.constant 3 : index
    %150 = memref.load %arg2[%149, %c3_39] : memref<6x12xf32, #tpu.memory_space<smem>>
    %151 = arith.index_cast %142 : i32 to index
    %c4_40 = arith.constant 4 : index
    %152 = memref.load %arg2[%151, %c4_40] : memref<6x12xf32, #tpu.memory_space<smem>>
    %153 = arith.index_cast %142 : i32 to index
    %c5_41 = arith.constant 5 : index
    %154 = memref.load %arg2[%153, %c5_41] : memref<6x12xf32, #tpu.memory_space<smem>>
    %155 = arith.index_cast %142 : i32 to index
    %c6_42 = arith.constant 6 : index
    %156 = memref.load %arg2[%155, %c6_42] : memref<6x12xf32, #tpu.memory_space<smem>>
    %157 = arith.index_cast %142 : i32 to index
    %c7_43 = arith.constant 7 : index
    %158 = memref.load %arg2[%157, %c7_43] : memref<6x12xf32, #tpu.memory_space<smem>>
    %159 = arith.index_cast %142 : i32 to index
    %c8_44 = arith.constant 8 : index
    %160 = memref.load %arg2[%159, %c8_44] : memref<6x12xf32, #tpu.memory_space<smem>>
    %161 = arith.index_cast %142 : i32 to index
    %c9_45 = arith.constant 9 : index
    %162 = memref.load %arg2[%161, %c9_45] : memref<6x12xf32, #tpu.memory_space<smem>>
    %163 = arith.index_cast %142 : i32 to index
    %c10_46 = arith.constant 10 : index
    %164 = memref.load %arg2[%163, %c10_46] : memref<6x12xf32, #tpu.memory_space<smem>>
    %165 = arith.index_cast %142 : i32 to index
    %c11_47 = arith.constant 11 : index
    %166 = memref.load %arg2[%165, %c11_47] : memref<6x12xf32, #tpu.memory_space<smem>>
    %167 = vector.broadcast %160 : f32 to vector<1x128xf32>
    %168 = arith.mulf %167, %2 : vector<1x128xf32>
    %169 = vector.broadcast %162 : f32 to vector<1x128xf32>
    %170 = arith.mulf %169, %3 : vector<1x128xf32>
    %171 = arith.addf %168, %170 : vector<1x128xf32>
    %172 = vector.broadcast %164 : f32 to vector<1x128xf32>
    %173 = arith.mulf %172, %4 : vector<1x128xf32>
    %174 = arith.addf %171, %173 : vector<1x128xf32>
    %175 = vector.broadcast %166 : f32 to vector<1x128xf32>
    %176 = arith.addf %174, %175 : vector<1x128xf32>
    %cst_48 = arith.constant 1.000000e-07 : f32
    %177 = vector.broadcast %cst_48 : f32 to vector<1x128xf32>
    %178 = arith.addf %176, %177 : vector<1x128xf32>
    %cst_49 = arith.constant 1.000000e+00 : f32
    %179 = vector.broadcast %cst_49 : f32 to vector<1x128xf32>
    %180 = arith.divf %179, %178 : vector<1x128xf32>
    %181 = vector.broadcast %144 : f32 to vector<1x128xf32>
    %182 = arith.mulf %181, %2 : vector<1x128xf32>
    %183 = vector.broadcast %146 : f32 to vector<1x128xf32>
    %184 = arith.mulf %183, %3 : vector<1x128xf32>
    %185 = arith.addf %182, %184 : vector<1x128xf32>
    %186 = vector.broadcast %148 : f32 to vector<1x128xf32>
    %187 = arith.mulf %186, %4 : vector<1x128xf32>
    %188 = arith.addf %185, %187 : vector<1x128xf32>
    %189 = vector.broadcast %150 : f32 to vector<1x128xf32>
    %190 = arith.addf %188, %189 : vector<1x128xf32>
    %191 = arith.mulf %190, %180 : vector<1x128xf32>
    %c0_50 = arith.constant 0 : index
    %c2_51 = arith.constant 2 : index
    %c0_52 = arith.constant 0 : index
    %c0_53 = arith.constant 0 : index
    %192 = vector.load %arg4[%c0_50, %c2_51, %c0_52, %c0_53] : memref<1x3x2x128xf32, #tpu.memory_space<vmem>>, vector<1x1x1x128xf32>
    %193 = vector.shape_cast %192 : vector<1x1x1x128xf32> to vector<1x128xf32>
    %194 = vector.shape_cast %191 : vector<1x128xf32> to vector<1x1x1x128xf32>
    tpu.vector_store %arg4[%c0_50, %c2_51, %c0_52, %c0_53], %194 {strides = array<i32>} : memref<1x3x2x128xf32, #tpu.memory_space<vmem>>, vector<1x1x1x128xf32>,
    %195 = vector.broadcast %152 : f32 to vector<1x128xf32>
    %196 = arith.mulf %195, %2 : vector<1x128xf32>
    %197 = vector.broadcast %154 : f32 to vector<1x128xf32>
    %198 = arith.mulf %197, %3 : vector<1x128xf32>
    %199 = arith.addf %196, %198 : vector<1x128xf32>
    %200 = vector.broadcast %156 : f32 to vector<1x128xf32>
    %201 = arith.mulf %200, %4 : vector<1x128xf32>
    %202 = arith.addf %199, %201 : vector<1x128xf32>
    %203 = vector.broadcast %158 : f32 to vector<1x128xf32>
    %204 = arith.addf %202, %203 : vector<1x128xf32>
    %205 = arith.mulf %204, %180 : vector<1x128xf32>
    %c0_54 = arith.constant 0 : index
    %c2_55 = arith.constant 2 : index
    %c1_56 = arith.constant 1 : index
    %c0_57 = arith.constant 0 : index
    %206 = vector.load %arg4[%c0_54, %c2_55, %c1_56, %c0_57] : memref<1x3x2x128xf32, #tpu.memory_space<vmem>>, vector<1x1x1x128xf32>
    %207 = vector.shape_cast %206 : vector<1x1x1x128xf32> to vector<1x128xf32>
    %208 = vector.shape_cast %205 : vector<1x128xf32> to vector<1x1x1x128xf32>
    tpu.vector_store %arg4[%c0_54, %c2_55, %c1_56, %c0_57], %208 {strides = array<i32>} : memref<1x3x2x128xf32, #tpu.memory_space<vmem>>, vector<1x1x1x128xf32>,
    return
  }
  func.func @transform_0(%arg0: i32, %arg1: i32) -> (i32, i32) {
    %c0_i32 = arith.constant 0 : i32
    %c0_i32_0 = arith.constant 0 : i32
    %c0_i32_1 = arith.constant 0 : i32
    return %c0_i32, %c0_i32_0 : i32, i32
  }
  func.func @transform_1(%arg0: i32, %arg1: i32) -> (i32, i32, i32) {
    %c0_i32 = arith.constant 0 : i32
    %c0_i32_0 = arith.constant 0 : i32
    return %arg0, %c0_i32, %arg1 : i32, i32, i32
  }
  func.func @transform_2(%arg0: i32, %arg1: i32) -> (i32, i32, i32, i32) {
    %c0_i32 = arith.constant 0 : i32
    %c0_i32_0 = arith.constant 0 : i32
    %c0_i32_1 = arith.constant 0 : i32
    return %arg0, %c0_i32, %c0_i32_0, %arg1 : i32, i32, i32, i32
  }
}

</mosaic_0001>

<llo_original>
// kernel: tpu_custom_call.1
$region0: #{tpu_custom_call.1}
  #allocation0 [shape = 'u32[]', space=smem, size = 0x4, offset = 0x4, fixed_abs, tag = 'smem constant byte address 0x4 - core index']
  #allocation1 [shape = 'u32[144,128]{1,0:T(1,128)}', space=vmem, size = 0x12000, scoped, tag = 'internal scratch']
  %s0 = inlined_call_operand.vmem [shape: f32[6,12], index: 0, kind: input, shape index: {}]
  %s1 = inlined_call_operand.vmem [shape: f32[2,3,128], index: 1, kind: input, shape index: {}]
  %s2 = inlined_call_operand.hbm [shape: f32[2,3,2,128], index: 2, kind: output, shape index: {}]
  %s3 = sld [smem:[#allocation0]]
  $region45: #{tpu_custom_call.1} parent=0
    _
  %s5 = ssub.s32 1, %s3
  %s6 = scalar_select 0, %s5, %s3
  $region1: #{tpu_custom_call.1} parent=0
    #allocation2 [shape = 'u8[4096]{0}', space=smem, size = 0x1000, scoped, tag = 'input window, operand 0, single buffered']
    #allocation3 [shape = 's32[2]{0}', space=sflag, size = 0x8, scoped, tag = 'scoped memory for tpu_custom_call.1']
    #allocation4 [shape = 's32[2]{0}', space=sflag, size = 0x8, scoped, tag = 'scoped memory for tpu_custom_call.1']
    #allocation5 [shape = 'u8[6144]{0}', space=vmem, size = 0x1800, scoped, tag = 'output window, operand 0']
    %7 = vsyncpa [#allocation4], 0
    %8 = vsyncpa [#allocation3], 0
    %s9 = scalar_lea.sflag [#allocation3], 1
    %10 = vsyncpa %s9, 0
    loop: start=0, step=1, limit=4
    $region2: #{tpu_custom_call.1} parent=1 // loop_pre_header
      _
    $region3: #{tpu_custom_call.1} parent=1 // loop_header
      %s12 = sphi 0, %s16
      %p13 = scmp.ge.s32.totalorder %s12, 4
      %s19 = sphi 0, %s31
      %s20 = sphi 0, %s27
      %s21 = sphi 0, %s19
      %s22 = sphi 0, %s20
      %s23 = sphi 0, %s21
      %s24 = sphi 0, %s22
      %s32 = sphi 0, %s32
      %s34 = sphi 0, %s32
      %s35 = sphi 0, %s34
      %s49 = sphi 0, %s35
      %s57 = sphi 0, %s59
      %s60 = sphi 0, %s57
      %s61 = sphi 0, %s60
      %s77 = sphi 0, %s61
      %s85 = sphi 0, %s87
      %s88 = sphi 0, %s85
      %s89 = sphi 0, %s88
      %s105 = sphi 0, %s89
    $region4: #{tpu_custom_call.1} parent=1 // loop_header_branch
      %15 = sbr.rel (%p13) target = $region8
    $region5: #{tpu_custom_call.1} parent=1 // loop_body
      %s17 = ssub.s32 %s12, 1
      %s18 = ssub.s32 %s12, 2
      %s25 = sadd.s32 1, %s20
      %p26 = scmp.ge.s32.totalorder %s25, 1
      %s27 = scalar_select %p26, 0, %s25
      %s28 = sadd.s32 1, %s19
      %s29 = scalar_select %p26, %s28, %s19
      %p30 = scmp.ge.s32.totalorder %s29, 2
      %s31 = scalar_select %p30, 0, %s29
      %s33 = sadd.s32 %s32, 1
      %p36 = scmp.eq.s32.totalorder %s12, 1
      %p37 = scmp.ne.s32.totalorder %s32, %s34
      %p38 = scmp.eq.s32.totalorder %s12, 0
      %p39 = por %p37, %p38
      %p40 = scmp.ne.s32.totalorder %s32, %s34
      %p41 = scmp.eq.s32.totalorder %s17, 1
      %p42 = por %p40, %p41
      %p43 = scmp.ne.s32.totalorder %s34, %s35
      %p44 = scmp.eq.s32.totalorder %s17, 0
      %p45 = por %p43, %p44
      %p46 = scmp.ne.s32.totalorder %s34, %s35
      %p47 = scmp.eq.s32.totalorder %s18, 1
      %p48 = por %p46, %p47
      %p50 = scmp.ne.s32.totalorder %s35, %s49
      %p51 = scmp.eq.s32.totalorder %s18, 0
      %p52 = por %p50, %p51
      %s53 = ssub.s32 %s19, %s31
      %s54 = ssub.s32 %s20, %s27
      %s55 = sor.u32 %s53, %s54
      %p56 = scmp.eq.s32.totalorder %s55, 0
      %s58 = sadd.s32 %s57, 1
      %s59 = scalar_select %p56, %s57, %s58
      %p62 = pneg %p56
      %p63 = scmp.eq.s32.totalorder %s12, 1
      %p64 = por %p62, %p63
      %p65 = scmp.ne.s32.totalorder %s57, %s60
      %p66 = scmp.eq.s32.totalorder %s12, 0
      %p67 = por %p65, %p66
      %p68 = scmp.ne.s32.totalorder %s57, %s60
      %p69 = scmp.eq.s32.totalorder %s17, 1
      %p70 = por %p68, %p69
      %p71 = scmp.ne.s32.totalorder %s60, %s61
      %p72 = scmp.eq.s32.totalorder %s17, 0
      %p73 = por %p71, %p72
      %p74 = scmp.ne.s32.totalorder %s60, %s61
      %p75 = scmp.eq.s32.totalorder %s18, 1
      %p76 = por %p74, %p75
      %p78 = scmp.ne.s32.totalorder %s61, %s77
      %p79 = scmp.eq.s32.totalorder %s18, 0
      %p80 = por %p78, %p79
      %s81 = ssub.s32 %s19, %s31
      %s82 = ssub.s32 %s20, %s27
      %s83 = sor.u32 %s81, %s82
      %p84 = scmp.eq.s32.totalorder %s83, 0
      %s86 = sadd.s32 %s85, 1
      %s87 = scalar_select %p84, %s85, %s86
      %p90 = pneg %p84
      %p91 = scmp.eq.s32.totalorder %s12, 1
      %p92 = por %p90, %p91
      %p93 = scmp.ne.s32.totalorder %s85, %s88
      %p94 = scmp.eq.s32.totalorder %s12, 0
      %p95 = por %p93, %p94
      %p96 = scmp.ne.s32.totalorder %s85, %s88
      %p97 = scmp.eq.s32.totalorder %s17, 1
      %p98 = por %p96, %p97
      %p99 = scmp.ne.s32.totalorder %s88, %s89
      %p100 = scmp.eq.s32.totalorder %s17, 0
      %p101 = por %p99, %p100
      %p102 = scmp.ne.s32.totalorder %s88, %s89
      %p103 = scmp.eq.s32.totalorder %s18, 1
      %p104 = por %p102, %p103
      %p106 = scmp.ne.s32.totalorder %s89, %s105
      %p107 = scmp.eq.s32.totalorder %s18, 0
      %p108 = por %p106, %p107
      %p109 = scmp.le.s32.totalorder 1, %s12
      %p110 = scmp.lt.s32.totalorder %s12, 3
      %p111 = pnand %p109, %p110
      %p112 = pneg %p111
      // Predicated region
      $region9: #{tpu_custom_call.1} parent=5 // pred_check
        _
      $region10: #{tpu_custom_call.1} parent=5 // pred_check_branch
        %114 = sbr.rel (%p111) target = $region12
      $region11: #{tpu_custom_call.1} parent=5 // pred_region
        %s115 = ssub.s32 %s12, 1
        // Predicated region
        $region13: #{tpu_custom_call.1} parent=11 // pred_check
          %p116 = pneg %p45
        $region14: #{tpu_custom_call.1} parent=11 // pred_check_branch
          %118 = sbr.rel (%p116) target = $region16
        $region15: #{tpu_custom_call.1} parent=11 // pred_region
          %s120 = ssub.s32 128, 128
          %121 = vsyncadd [#allocation4], %s120
          %s123 = sshll.u32 %s0, 4
          %s124 = int_to_ptr.vmem [resolvable:$true] %s123
          %126 = dma.vmem_to_smem %s124, 128, [#allocation2], [#allocation4]
        $region16: #{tpu_custom_call.1} parent=11 // pred_fallthru
          _
      $region12: #{tpu_custom_call.1} parent=5 // pred_fallthru
        _
      %p127 = scmp.lt.s32.totalorder %s12, 2
      // Predicated region
      $region17: #{tpu_custom_call.1} parent=5 // pred_check
        %p128 = pneg %p127
      $region18: #{tpu_custom_call.1} parent=5 // pred_check_branch
        %130 = sbr.rel (%p128) target = $region20
      $region19: #{tpu_custom_call.1} parent=5 // pred_region
        // Predicated region
        $region21: #{tpu_custom_call.1} parent=19 // pred_check
          %p131 = pneg %p67
        $region22: #{tpu_custom_call.1} parent=19 // pred_check_branch
          %133 = sbr.rel (%p131) target = $region24
        $region23: #{tpu_custom_call.1} parent=19 // pred_region
          %p134 = scmp.lt.s32.totalorder %s19, 1
          %s135 = scalar_select %p134, %s19, 1
          %p136 = scmp.lt.s32.totalorder %s20, 0
          %s137 = scalar_select %p136, %s20, 0
          %s138 = sadd.s32 %s137, %s135
          %s139 = smul.addr %s138, 4
          %s140 = scalar_lea.vmem %s1, %s139
        $region24: #{tpu_custom_call.1} parent=19 // pred_fallthru
          _
      $region20: #{tpu_custom_call.1} parent=5 // pred_fallthru
        _
      %p141 = scmp.le.s32.totalorder 1, %s12
      %p142 = scmp.lt.s32.totalorder %s12, 3
      %p143 = pnand %p141, %p142
      %p144 = pneg %p143
      // Predicated region
      $region25: #{tpu_custom_call.1} parent=5 // pred_check
        _
      $region26: #{tpu_custom_call.1} parent=5 // pred_check_branch
        %146 = sbr.rel (%p143) target = $region28
      $region27: #{tpu_custom_call.1} parent=5 // pred_region
        %s147 = ssub.s32 %s12, 1
        // Predicated region
        $region29: #{tpu_custom_call.1} parent=27 // pred_check
          %p148 = pneg %p45
        $region30: #{tpu_custom_call.1} parent=27 // pred_check_branch
          %150 = sbr.rel (%p148) target = $region32
        $region31: #{tpu_custom_call.1} parent=27 // pred_region
          %151 = dma.done [#allocation4], 128
        $region32: #{tpu_custom_call.1} parent=27 // pred_fallthru
          _
        %152 = sfence
        %p153 = pneg %p45
        %p154 = pneg %p42
        %p155 = scmp.lt.s32.totalorder %s21, 1
        %s156 = scalar_select %p155, %s21, 1
        %p157 = scmp.lt.s32.totalorder %s22, 0
        %s158 = scalar_select %p157, %s22, 0
        %s159 = sadd.s32 %s158, %s156
        %s160 = smul.addr %s159, 4
        %s161 = scalar_lea.vmem %s1, %s160
        %p162 = pneg %p73
        %p163 = pneg %p70
        %p164 = pneg %p101
        %p165 = pneg %p98
        %s166 = sand.u32 %s88, 1
        %s167 = scalar_lea.sflag [#allocation3], %s166
        %s168 = sand.u32 %s88, 1
        %s169 = smul.addr %s168, 6
        %s170 = scalar_lea.vmem [#allocation5], %s169
        %p171 = scmp.lt.s32.totalorder %s21, 1
        %s172 = scalar_select %p171, %s21, 1
        %p173 = scmp.lt.s32.totalorder %s22, 0
        %s174 = scalar_select %p173, %s22, 0
        %s175 = sadd.s32 %s174, %s172
        %s176 = smul.addr %s175, 4
        %s177 = scalar_lea.vmem %s1, %s176
        %v178 = vld [vmem:[%s177] sm:$0x7]
        %s179 = smul.u32 %s21, 3
        %s180 = smul.u32 %s179, 128
        %s181 = sld [smem:[#allocation2 + %s180]]
        %s182 = sadd.s32 %s180, 1
        %s183 = sld [smem:[#allocation2 + %s182]]
        %s184 = sadd.s32 %s180, 2
        %s185 = sld [smem:[#allocation2 + %s184]]
        %s186 = sadd.s32 %s180, 3
        %s187 = sld [smem:[#allocation2 + %s186]]
        %s188 = sadd.s32 %s180, 4
        %s189 = sld [smem:[#allocation2 + %s188]]
        %s190 = sadd.s32 %s180, 5
        %s191 = sld [smem:[#allocation2 + %s190]]
        %s192 = sadd.s32 %s180, 6
        %s193 = sld [smem:[#allocation2 + %s192]]
        %s194 = sadd.s32 %s180, 7
        %s195 = sld [smem:[#allocation2 + %s194]]
        %s196 = sadd.s32 %s180, 8
        %s197 = sld [smem:[#allocation2 + %s196]]
        %s198 = sadd.s32 %s180, 9
        %s199 = sld [smem:[#allocation2 + %s198]]
        %s200 = sadd.s32 %s180, 10
        %s201 = sld [smem:[#allocation2 + %s200]]
        %s202 = sadd.s32 %s180, 11
        %s203 = sld [smem:[#allocation2 + %s202]]
        %v204 = vstv %s197
        %v205 = vmul.f32 %v204, %v178
        %v206 = vstv %s199
        %v207 = vmul.f32 %v206, %v178
        %v209 = vrot.slane %v207, 1
        %v211 = vadd.f32 %v205, %v209
        %v212 = vstv %s201
        %v213 = vmul.f32 %v212, %v178
        %v215 = vrot.slane %v213, 2
        %v217 = vadd.f32 %v211, %v215
        %v218 = vstv %s203
        %v219 = vadd.f32 %v217, %v218
        %v220 = vadd.f32 %v219, 1e-07
        %v221 = vrcp.pop %v220
        %v222 = vmul.f32 1.0, %v221
        %v223 = vstv %s181
        %v224 = vmul.f32 %v223, %v178
        %v225 = vstv %s183
        %v226 = vmul.f32 %v225, %v178
        %v228 = vrot.slane %v226, 1
        %v230 = vadd.f32 %v224, %v228
        %v231 = vstv %s185
        %v232 = vmul.f32 %v231, %v178
        %v234 = vrot.slane %v232, 2
        %v236 = vadd.f32 %v230, %v234
        %v237 = vstv %s187
        %v238 = vadd.f32 %v236, %v237
        %v239 = vmul.f32 %v238, %v222
        %240 = vst [vmem:[%s170] sm:$0x1] %v239
        %v241 = vstv %s189
        %v242 = vmul.f32 %v241, %v178
        %v243 = vstv %s191
        %v244 = vmul.f32 %v243, %v178
        %v246 = vrot.slane %v244, 1
        %v248 = vadd.f32 %v242, %v246
        %v249 = vstv %s193
        %v250 = vmul.f32 %v249, %v178
        %v252 = vrot.slane %v250, 2
        %v254 = vadd.f32 %v248, %v252
        %v255 = vstv %s195
        %v256 = vadd.f32 %v254, %v255
        %v257 = vmul.f32 %v256, %v222
        %258 = vst [vmem:[%s170 + $0x1] sm:$0x1] %v257
        %s259 = sadd.s32 %s179, 1
        %s260 = smul.u32 %s259, 128
        %s261 = sld [smem:[#allocation2 + %s260]]
        %s262 = sadd.s32 %s260, 1
        %s263 = sld [smem:[#allocation2 + %s262]]
        %s264 = sadd.s32 %s260, 2
        %s265 = sld [smem:[#allocation2 + %s264]]
        %s266 = sadd.s32 %s260, 3
        %s267 = sld [smem:[#allocation2 + %s266]]
        %s268 = sadd.s32 %s260, 4
        %s269 = sld [smem:[#allocation2 + %s268]]
        %s270 = sadd.s32 %s260, 5
        %s271 = sld [smem:[#allocation2 + %s270]]
        %s272 = sadd.s32 %s260, 6
        %s273 = sld [smem:[#allocation2 + %s272]]
        %s274 = sadd.s32 %s260, 7
        %s275 = sld [smem:[#allocation2 + %s274]]
        %s276 = sadd.s32 %s260, 8
        %s277 = sld [smem:[#allocation2 + %s276]]
        %s278 = sadd.s32 %s260, 9
        %s279 = sld [smem:[#allocation2 + %s278]]
        %s280 = sadd.s32 %s260, 10
        %s281 = sld [smem:[#allocation2 + %s280]]
        %s282 = sadd.s32 %s260, 11
        %s283 = sld [smem:[#allocation2 + %s282]]
        %v284 = vstv %s277
        %v285 = vmul.f32 %v284, %v178
        %v286 = vstv %s279
        %v287 = vmul.f32 %v286, %v178
        %v289 = vrot.slane %v287, 1
        %v291 = vadd.f32 %v285, %v289
        %v292 = vstv %s281
        %v293 = vmul.f32 %v292, %v178
        %v295 = vrot.slane %v293, 2
        %v297 = vadd.f32 %v291, %v295
        %v298 = vstv %s283
        %v299 = vadd.f32 %v297, %v298
        %v300 = vadd.f32 %v299, 1e-07
        %v301 = vrcp.pop %v300
        %v302 = vmul.f32 1.0, %v301
        %v303 = vstv %s261
        %v304 = vmul.f32 %v303, %v178
        %v305 = vstv %s263
        %v306 = vmul.f32 %v305, %v178
        %v308 = vrot.slane %v306, 1
        %v310 = vadd.f32 %v304, %v308
        %v311 = vstv %s265
        %v312 = vmul.f32 %v311, %v178
        %v314 = vrot.slane %v312, 2
        %v316 = vadd.f32 %v310, %v314
        %v317 = vstv %s267
        %v318 = vadd.f32 %v316, %v317
        %v319 = vmul.f32 %v318, %v302
        %s320 = scalar_lea.vmem %s170, 2 [#allocation5]
        %321 = vst [vmem:[%s320] sm:$0x1] %v319
        %v322 = vstv %s269
        %v323 = vmul.f32 %v322, %v178
        %v324 = vstv %s271
        %v325 = vmul.f32 %v324, %v178
        %v327 = vrot.slane %v325, 1
        %v329 = vadd.f32 %v323, %v327
        %v330 = vstv %s273
        %v331 = vmul.f32 %v330, %v178
        %v333 = vrot.slane %v331, 2
        %v335 = vadd.f32 %v329, %v333
        %v336 = vstv %s275
        %v337 = vadd.f32 %v335, %v336
        %v338 = vmul.f32 %v337, %v302
        %339 = vst [vmem:[%s320 + $0x1] sm:$0x1] %v338
        %s340 = sadd.s32 %s179, 2
        %s341 = smul.u32 %s340, 128
        %s342 = sld [smem:[#allocation2 + %s341]]
        %s343 = sadd.s32 %s341, 1
        %s344 = sld [smem:[#allocation2 + %s343]]
        %s345 = sadd.s32 %s341, 2
        %s346 = sld [smem:[#allocation2 + %s345]]
        %s347 = sadd.s32 %s341, 3
        %s348 = sld [smem:[#allocation2 + %s347]]
        %s349 = sadd.s32 %s341, 4
        %s350 = sld [smem:[#allocation2 + %s349]]
        %s351 = sadd.s32 %s341, 5
        %s352 = sld [smem:[#allocation2 + %s351]]
        %s353 = sadd.s32 %s341, 6
        %s354 = sld [smem:[#allocation2 + %s353]]
        %s355 = sadd.s32 %s341, 7
        %s356 = sld [smem:[#allocation2 + %s355]]
        %s357 = sadd.s32 %s341, 8
        %s358 = sld [smem:[#allocation2 + %s357]]
        %s359 = sadd.s32 %s341, 9
        %s360 = sld [smem:[#allocation2 + %s359]]
        %s361 = sadd.s32 %s341, 10
        %s362 = sld [smem:[#allocation2 + %s361]]
        %s363 = sadd.s32 %s341, 11
        %s364 = sld [smem:[#allocation2 + %s363]]
        %v365 = vstv %s358
        %v366 = vmul.f32 %v365, %v178
        %v367 = vstv %s360
        %v368 = vmul.f32 %v367, %v178
        %v370 = vrot.slane %v368, 1
        %v372 = vadd.f32 %v366, %v370
        %v373 = vstv %s362
        %v374 = vmul.f32 %v373, %v178
        %v376 = vrot.slane %v374, 2
        %v378 = vadd.f32 %v372, %v376
        %v379 = vstv %s364
        %v380 = vadd.f32 %v378, %v379
        %v381 = vadd.f32 %v380, 1e-07
        %v382 = vrcp.pop %v381
        %v383 = vmul.f32 1.0, %v382
        %v384 = vstv %s342
        %v385 = vmul.f32 %v384, %v178
        %v386 = vstv %s344
        %v387 = vmul.f32 %v386, %v178
        %v389 = vrot.slane %v387, 1
        %v391 = vadd.f32 %v385, %v389
        %v392 = vstv %s346
        %v393 = vmul.f32 %v392, %v178
        %v395 = vrot.slane %v393, 2
        %v397 = vadd.f32 %v391, %v395
        %v398 = vstv %s348
        %v399 = vadd.f32 %v397, %v398
        %v400 = vmul.f32 %v399, %v383
        %s401 = scalar_lea.vmem %s170, 4 [#allocation5]
        %402 = vst [vmem:[%s401] sm:$0x1] %v400
        %v403 = vstv %s350
        %v404 = vmul.f32 %v403, %v178
        %v405 = vstv %s352
        %v406 = vmul.f32 %v405, %v178
        %v408 = vrot.slane %v406, 1
        %v410 = vadd.f32 %v404, %v408
        %v411 = vstv %s354
        %v412 = vmul.f32 %v411, %v178
        %v414 = vrot.slane %v412, 2
        %v416 = vadd.f32 %v410, %v414
        %v417 = vstv %s356
        %v418 = vadd.f32 %v416, %v417
        %v419 = vmul.f32 %v418, %v383
        %420 = vst [vmem:[%s401 + $0x1] sm:$0x1] %v419
        %s421 = sand.u32 %s88, 1
        %s422 = scalar_lea.sflag [#allocation3], %s421
        %s423 = sand.u32 %s88, 1
        %s424 = smul.addr %s423, 6
        %s425 = scalar_lea.vmem [#allocation5], %s424
        // Predicated region
        $region33: #{tpu_custom_call.1} parent=27 // pred_check
          %p426 = pneg %p98
        $region34: #{tpu_custom_call.1} parent=27 // pred_check_branch
          %428 = sbr.rel (%p426) target = $region36
        $region35: #{tpu_custom_call.1} parent=27 // pred_region
          %s430 = ssub.s32 96, 96
          %431 = vsyncadd %s422, %s430
          %s432 = smul.addr %s21, 3
          %s433 = sadd.s32 %s22, %s432
          %s434 = smul.addr %s433, 32
          %s435 = scalar_lea.hbm %s2, %s434
          %s436 = sshll.u32 %s425, 4
          %s437 = int_to_ptr.vmem [resolvable:$true] %s436
          %442 = dma.vmem_to_hbm [thread:$0]  %s437, 96, %s435, %s422, 32, 32, 2
        $region36: #{tpu_custom_call.1} parent=27 // pred_fallthru
          _
      $region28: #{tpu_custom_call.1} parent=5 // pred_fallthru
        _
      %p443 = scmp.le.s32.totalorder 2, %s12
      // Predicated region
      $region37: #{tpu_custom_call.1} parent=5 // pred_check
        %p444 = pneg %p443
      $region38: #{tpu_custom_call.1} parent=5 // pred_check_branch
        %446 = sbr.rel (%p444) target = $region40
      $region39: #{tpu_custom_call.1} parent=5 // pred_region
        %s447 = ssub.s32 %s12, 2
        // Predicated region
        $region41: #{tpu_custom_call.1} parent=39 // pred_check
          %p448 = pneg %p104
        $region42: #{tpu_custom_call.1} parent=39 // pred_check_branch
          %450 = sbr.rel (%p448) target = $region44
        $region43: #{tpu_custom_call.1} parent=39 // pred_region
          %s451 = sand.u32 %s89, 1
          %s452 = scalar_lea.sflag [#allocation3], %s451
          %s453 = sand.u32 %s89, 1
          %s454 = smul.addr %s453, 6
          %s455 = scalar_lea.vmem [#allocation5], %s454
          %456 = dma.done %s452, 96
        $region44: #{tpu_custom_call.1} parent=39 // pred_fallthru
          _
      $region40: #{tpu_custom_call.1} parent=5 // pred_fallthru
        _
    $region6: #{tpu_custom_call.1} parent=1 // loop_footer
      %s16 = sadd.s32 1, %s12
    $region7: #{tpu_custom_call.1} parent=1 // loop_footer_branch
      %11 = sbr.rel target = $region3
    $region8: #{tpu_custom_call.1} parent=1 // loop_exit
      _
    %457 = vsyncpa [#allocation3], 1
    %s458 = scalar_lea.sflag [#allocation3], 1
    %459 = vsyncpa %s458, 1
    %460 = vsyncpa [#allocation4], 1
    %s461 = scalar_lea.sflag [#allocation4], 1
    %462 = vsyncpa %s461, 1

</llo_original>
